<compile_context>
chip_gen: v7x
topology: tpu7x:2x2x1
jax: 0.10.0
libtpu: 0.0.40
codegen_flags: <defaults>
</compile_context>

<pallas_src>
import functools

import numpy as np
import jax
import jax.numpy as jnp
from jax import lax
from jax.experimental import pallas as pl
from jax.experimental.pallas import tpu as pltpu


# ----------------------------------------------------------------------------- helpers

def _vmem_capacity_bytes():
    """Best-effort query of physical VMEM; conservative (v7x-sized) fallback."""
    try:
        info = pltpu.get_tpu_info()
        cap = getattr(info, "vmem_capacity_bytes", None)
        if cap:
            return int(cap)
    except Exception:
        pass
    return 64 * 1024 * 1024


# Probe whether pipeline_mode=pl.Buffered(1) is constructible in this jax version;
# fall back to default (double-buffered) specs otherwise.
try:
    _BUF1 = pl.Buffered(1)
    pl.BlockSpec((1, 1), lambda g: (0, 0), pipeline_mode=_BUF1)
except Exception:  # pragma: no cover - older/newer API
    _BUF1 = None


def _const_spec(shape):
    """BlockSpec for a grid-invariant input; single-buffered when supported."""
    nd = len(shape)
    idx = lambda g: (0,) * nd
    if _BUF1 is not None:
        return pl.BlockSpec(shape, idx, pipeline_mode=_BUF1)
    return pl.BlockSpec(shape, idx)


def _pick_tb(batch, requested, vmem_cap):
    """Docs per grid step: divisor of B, sized to VMEM, keeping >= 2 grid steps."""
    if requested is None:
        requested = 8 if vmem_cap <= 64 * 1024 * 1024 else 32   # v7x vs v5e/v6e
    requested = max(1, min(int(requested), batch))
    tb = 1
    for d in range(1, requested + 1):
        if batch % d == 0:
            tb = d
    # Prefer a grid of >= 2 steps (v7x has 2 TensorCores on the "parallel" axis).
    while tb > 1 and batch // tb < 2:
        nd = 1
        for d in range(1, tb):
            if batch % d == 0:
                nd = d
        tb = nd
    return tb


# ----------------------------------------------------------------------------- kernel

def _emotion_kernel(cp_ref, seq_ref, cls_ref, w1a_ref, b1_ref, w2_ref, b2_ref, out_ref):
    """One grid step = TB documents.

    cp_ref  : (TB, 1, C+2) int32  -- [clause boundary positions (C+1) | doc_len] per doc
    seq_ref : (TB, S, H)   f32/bf16 -- BERT sequence_output for these docs (cast to bf16 here)
    cls_ref : (TB, 1, 2H)  f32    -- precomputed seq[:,0,:] @ W_cls (hoisted out of kernel)
    w1a_ref : (H, 2H)      bf16   -- Pooler weight, mean half
    b1_ref  : (1, 2H) f32, w2_ref: (1, 2H) f32 (head as a row), b2_ref: (1, 1) f32
    out_ref : (TB, 1, C)   f32    -- logits (C is padded to a multiple of 8)
    """
    TB, S, H = seq_ref.shape
    C = out_ref.shape[2]
    H2 = w1a_ref.shape[1]

    cpd = cp_ref[:, 0, :]                       # (TB, C+2) int32
    cp = cpd[:, :C + 1]                         # clause boundary positions
    dl = cpd[:, C + 1:C + 2]                    # (TB, 1) doc lengths

    # Clause c (0-indexed) covers tokens [1 + cp[c] - cp[0], 1 + cp[c+1] - cp[0]),
    # with the last clause of each doc extended by one token (torch split_size[-1] += 1).
    clause_idx = lax.broadcasted_iota(jnp.int32, (TB, C), 1)
    start = 1 + cp[:, :C] - cp[:, 0:1]                                    # (TB, C)
    end = 1 + cp[:, 1:] - cp[:, 0:1] + jnp.where(clause_idx == dl - 1, 1, 0)
    valid = (clause_idx < dl).astype(jnp.float32)                         # (TB, C)
    seg_len = end - start                                                 # (TB, C) int32, >= 0
    length = jnp.maximum(seg_len, 1).astype(jnp.float32)

    # Segment mask in (C, S) layout (tokens on lanes) via one unsigned compare:
    #   token in [start, end)  <=>  (tok - start) u< (end - start)
    tok = lax.broadcasted_iota(jnp.int32, (TB, C, S), 2)
    off = tok - start[:, :, None]
    mask = (off.astype(jnp.uint32)
            < seg_len[:, :, None].astype(jnp.uint32)).astype(jnp.bfloat16)  # (TB, C, S)

    # Cast seq to bf16 *after* the DMA (no wrapper-side HBM cast pass).
    seq = seq_ref[...].astype(jnp.bfloat16)                               # (TB, S, H)

    # Segment sums as a lane-dense batched (C,S)@(S,H) bf16 matmul, f32 accumulation.
    seg_sum = jnp.einsum('bcs,bsh->bch', mask, seq,
                         preferred_element_type=jnp.float32)              # (TB, C, H) f32
    # Segment mean: scale the f32 accumulator (invalid / padded clauses -> zero rows).
    mean_part = seg_sum * (valid / length)[:, :, None]                    # (TB, C, H)

    # Pooler Linear(2H, 2H), mean half only (CLS half is precomputed outside the kernel):
    #   (TB*C, H) @ (H, 2H)  -- C padded to x8 so the reshape is layout preserving.
    mean2d = mean_part.reshape(TB * C, H).astype(jnp.bfloat16)
    mean_proj = jnp.dot(mean2d, w1a_ref[...],
                        preferred_element_type=jnp.float32).reshape(TB, C, H2)

    cls_proj = cls_ref[:, 0, :]                                           # (TB, 2H) f32
    pre = mean_proj + valid[:, :, None] * cls_proj[:, None, :] + b1_ref[...]
    pooled = jnp.tanh(pre)                                                # (TB, C, 2H) f32

    # Multilabel head Linear(2H, 1) as a VPU/XLU reduction (avoids an N=1 MXU matmul).
    logits = jnp.sum(pooled * w2_ref[...], axis=-1) + b2_ref[...]         # (TB, C)
    out_ref[:, 0, :] = logits


# ----------------------------------------------------------------------------- wrapper

@functools.partial(jax.jit, static_argnums=(8, 9))
def _forward_jit(sequence_output, context_h, clauses_positions, doc_lens,
                 w1, b1, w2, b2, tb, vmem_limit):
    B, S, H = sequence_output.shape
    C = clauses_positions.shape[1] - 1
    H2 = 2 * H
    Cp = max(8, -(-C // 8) * 8)                  # pad clause axis to a multiple of 8

    # Tiny index tables: pad C by edge-replicating the last boundary (padded clauses get
    # start == end and are masked out by `valid` since doc_len <= C).
    cp_i = clauses_positions.astype(jnp.int32)
    if Cp != C:
        cp_i = jnp.pad(cp_i, ((0, 0), (0, Cp - C)), mode="edge")
    dl_i = doc_lens.astype(jnp.int32)
    cpd = jnp.concatenate([cp_i, dl_i[:, None]], axis=1).reshape(B, 1, Cp + 2)

    # Hoisted CLS projection: one (B,H)@(H,2H) matmul for the whole batch in XLA
    # (full weight load once, instead of once per grid step inside the kernel).
    cls_proj = jnp.dot(sequence_output[:, 0, :].astype(jnp.float32),
                       w1[H:].astype(jnp.float32),
                       preferred_element_type=jnp.float32).reshape(B, 1, H2)

    w1a = w1[:H].astype(jnp.bfloat16)            # Pooler weight, mean half (bf16, tiny cast)
    b1r = b1.reshape(1, H2).astype(jnp.float32)
    w2r = w2.reshape(1, H2).astype(jnp.float32)  # head as a lane-dense row
    b2r = b2.reshape(1, 1).astype(jnp.float32)

    grid_spec = pltpu.PrefetchScalarGridSpec(
        num_scalar_prefetch=0,
        grid=(B // tb,),
        in_specs=[
            pl.BlockSpec((tb, 1, Cp + 2), lambda g: (g, 0, 0)),   # clause positions + doc_len
            pl.BlockSpec((tb, S, H), lambda g: (g, 0, 0)),        # sequence_output (native dtype)
            pl.BlockSpec((tb, 1, H2), lambda g: (g, 0, 0)),       # precomputed CLS projection
            _const_spec((H, H2)),                                 # pooler W (mean half), bf16
            _const_spec((1, H2)),                                 # pooler bias
            _const_spec((1, H2)),                                 # multilabel W row
            _const_spec((1, 1)),                                  # multilabel bias
        ],
        out_specs=pl.BlockSpec((tb, 1, Cp), lambda g: (g, 0, 0)),
    )

    seq_bytes = int(np.dtype(sequence_output.dtype).itemsize)
    cost = pl.CostEstimate(
        flops=int(2 * B * Cp * S * H + 2 * B * Cp * H * H2),
        transcendentals=int(B * Cp * H2),
        bytes_accessed=int(B * S * H * seq_bytes + B * H2 * 4 + H * H2 * 2
                           + B * Cp * 4 + B * (Cp + 2) * 4),
    )

    logits3 = pl.pallas_call(
        _emotion_kernel,
        grid_spec=grid_spec,
        out_shape=jax.ShapeDtypeStruct((B, 1, Cp), jnp.float32),
        compiler_params=pltpu.CompilerParams(
            dimension_semantics=("parallel",),
            vmem_limit_bytes=int(vmem_limit),
        ),
        cost_estimate=cost,
    )(cpd, sequence_output, cls_proj, w1a, b1r, w2r, b2r)

    logits = logits3[:, 0, :C]                   # (B, C), drop clause padding
    return logits, sequence_output, context_h


def emotion_context_forward(sequence_output, context_h, clauses_positions, doc_lens,
                            w1, b1, w2, b2, *, tb=None):
    """clause_output -> Pooler(tanh(Linear)) -> Linear(2H,1) multilabel head."""
    B = sequence_output.shape[0]
    vmem_cap = _vmem_capacity_bytes()
    tb_ = _pick_tb(B, tb, vmem_cap)
    # ~3/4 of physical VMEM, capped: ~48 MiB on a 64 MiB v7x part, ~96 MiB on v5e/v6e.
    vmem_limit = min(vmem_cap * 3 // 4, 100 * 1024 * 1024)
    return _forward_jit(sequence_output, context_h, clauses_positions, doc_lens,
                        w1, b1, w2, b2, tb_, vmem_limit)


# ----------------------------------------------------------------------------- reference

def _reference_logits(seq, cp, doc_lens, w1, b1, w2, b2):
    """Pure numpy re-implementation of clause_output + Pooler + multilabel head."""
    B, S, H = seq.shape
    C = cp.shape[1] - 1
    clause_h = np.zeros((B, C, 2 * H), np.float32)
    for bb in range(B):
        dl = int(doc_lens[bb])
        cls = seq[bb, 0]
        for i in range(1, dl + 1):
            start = 1 + int(cp[bb, i - 1]) - int(cp[bb, 0])
            end = 1 + int(cp[bb, i]) - int(cp[bb, 0]) + (1 if i == dl else 0)
            mean = seq[bb, start:end].mean(axis=0)
            clause_h[bb, i - 1] = np.concatenate([mean, cls])
    pooled = np.tanh(clause_h @ w1 + b1)                                  # Pooler
    logits = pooled @ w2 + b2                                             # Linear(2H, 1)
    return logits[..., 0]


if __name__ == "__main__":
    B, S, H, C = 4, 16, 32, 3          # batch, seq len, BERT hidden, max clauses per doc
    H2 = 2 * H                         # pooler width (stands in for 1536 = 2*768)

    key = jax.random.PRNGKey(0)
    k_seq, k_ctx, k_w1, k_b1, k_w2, k_b2 = jax.random.split(key, 6)

    # Synthetic BERT outputs (see TODO(synk) above).
    sequence_output = jax.random.normal(k_seq, (B, S, H), jnp.float32)
    context_h = jax.random.normal(k_ctx, (B, H), jnp.float32)

    # Clause boundary positions and doc lengths.
    clauses_positions = jnp.array([[1, 5, 9, 13],
                                   [1, 6, 12, 12],
                                   [1, 4, 8, 15],
                                   [1, 10, 10, 10]], jnp.int32)           # (B, C+1)
    doc_lens = jnp.array([3, 2, 3, 1], jnp.int32)                         # (B,)

    # Deterministic parameter init (torch nn.Linear-style uniform).
    lim = 1.0 / np.sqrt(H2)
    w1 = jax.random.uniform(k_w1, (H2, H2), jnp.float32, -lim, lim)       # Pooler.dense
    b1 = jax.random.uniform(k_b1, (1, H2), jnp.float32, -lim, lim)
    w2 = jax.random.uniform(k_w2, (H2, 1), jnp.float32, -lim, lim)        # multilabel_output
    b2 = jax.random.uniform(k_b2, (1, 1), jnp.float32, -lim, lim)

    logits, seq_out, ctx_out = emotion_context_forward(
        sequence_output, context_h, clauses_positions, doc_lens,
        w1, b1, w2, b2)                # tb auto-picked: divisor of B, grid >= 2 steps
    jax.block_until_ready(logits)

    ref = _reference_logits(np.asarray(sequence_output), np.asarray(clauses_positions),
                            np.asarray(doc_lens), np.asarray(w1), np.asarray(b1),
                            np.asarray(w2), np.asarray(b2))
    np.testing.assert_allclose(np.asarray(logits), ref, rtol=3e-2, atol=3e-2)
    assert logits.shape == (B, C)

    print("KERNEL_OK")
</pallas_src>

<mosaic_0001>
module attributes {stable_mosaic.version = 11 : i64} {
  func.func @_emotion_kernel(%arg0: i32, %arg1: memref<2x1x10xi32, #tpu.memory_space<vmem>>, %arg2: memref<2x16x32xf32, #tpu.memory_space<vmem>>, %arg3: memref<2x1x64xf32, #tpu.memory_space<vmem>>, %arg4: memref<32x64xbf16, #tpu.memory_space<vmem>>, %arg5: memref<1x64xf32, #tpu.memory_space<vmem>>, %arg6: memref<1x64xf32, #tpu.memory_space<vmem>>, %arg7: memref<1x1xf32, #tpu.memory_space<vmem>>, %arg8: memref<2x1x8xf32, #tpu.memory_space<vmem>>) attributes {dimension_semantics = [#tpu.dimension_semantics<parallel>], iteration_bounds = array<i64: 2>, scalar_prefetch = 0 : i64, scratch_operands = 0 : i64, tpu.core_type = #tpu.core_type<tc>, window_params = [{transform_indices = @transform_0, window_bounds = array<i64: 2, 1, 10>}, {transform_indices = @transform_1, window_bounds = array<i64: 2, 16, 32>}, {transform_indices = @transform_2, window_bounds = array<i64: 2, 1, 64>}, {pipeline_mode = #tpu.pipeline_mode<synchronous>, transform_indices = @transform_3, window_bounds = array<i64: 32, 64>}, {pipeline_mode = #tpu.pipeline_mode<synchronous>, transform_indices = @transform_4, window_bounds = array<i64: 1, 64>}, {pipeline_mode = #tpu.pipeline_mode<synchronous>, transform_indices = @transform_5, window_bounds = array<i64: 1, 64>}, {pipeline_mode = #tpu.pipeline_mode<synchronous>, transform_indices = @transform_6, window_bounds = array<i64: 1, 1>}, {transform_indices = @transform_7, window_bounds = array<i64: 2, 1, 8>}]} {
    %c0 = arith.constant 0 : index
    %c0_0 = arith.constant 0 : index
    %c0_1 = arith.constant 0 : index
    %0 = vector.load %arg1[%c0, %c0_0, %c0_1] : memref<2x1x10xi32, #tpu.memory_space<vmem>>, vector<2x1x10xi32>
    %1 = vector.shape_cast %0 : vector<2x1x10xi32> to vector<2x10xi32>
    %2 = vector.extract_strided_slice %1 {offsets = [0, 0], sizes = [2, 9], strides = [1, 1]} : vector<2x10xi32> to vector<2x9xi32>
    %3 = vector.extract_strided_slice %1 {offsets = [0, 9], sizes = [2, 1], strides = [1, 1]} : vector<2x10xi32> to vector<2x1xi32>
    %4 = tpu.iota {dimensions = array<i32: 1>} : vector<2x8xi32>
    %5 = vector.extract_strided_slice %2 {offsets = [0, 0], sizes = [2, 8], strides = [1, 1]} : vector<2x9xi32> to vector<2x8xi32>
    %c1_i32 = arith.constant 1 : i32
    %6 = vector.broadcast %c1_i32 : i32 to vector<2x8xi32>
    %7 = arith.addi %6, %5 : vector<2x8xi32>
    %8 = vector.extract_strided_slice %2 {offsets = [0, 0], sizes = [2, 1], strides = [1, 1]} : vector<2x9xi32> to vector<2x1xi32>
    %9 = vector.broadcast %8 : vector<2x1xi32> to vector<2x8xi32>
    %10 = arith.subi %7, %9 : vector<2x8xi32>
    %11 = vector.extract_strided_slice %2 {offsets = [0, 1], sizes = [2, 8], strides = [1, 1]} : vector<2x9xi32> to vector<2x8xi32>
    %c1_i32_2 = arith.constant 1 : i32
    %12 = vector.broadcast %c1_i32_2 : i32 to vector<2x8xi32>
    %13 = arith.addi %12, %11 : vector<2x8xi32>
    %14 = vector.extract_strided_slice %2 {offsets = [0, 0], sizes = [2, 1], strides = [1, 1]} : vector<2x9xi32> to vector<2x1xi32>
    %15 = vector.broadcast %14 : vector<2x1xi32> to vector<2x8xi32>
    %16 = arith.subi %13, %15 : vector<2x8xi32>
    %c1_i32_3 = arith.constant 1 : i32
    %17 = vector.broadcast %c1_i32_3 : i32 to vector<2x1xi32>
    %18 = arith.subi %3, %17 : vector<2x1xi32>
    %19 = vector.broadcast %18 : vector<2x1xi32> to vector<2x8xi32>
    %20 = arith.cmpi eq, %4, %19 : vector<2x8xi32>
    %c1_i32_4 = arith.constant 1 : i32
    %c0_i32 = arith.constant 0 : i32
    %21 = vector.broadcast %c1_i32_4 : i32 to vector<2x8xi32>
    %22 = vector.broadcast %c0_i32 : i32 to vector<2x8xi32>
    %23 = arith.select %20, %21, %22 : vector<2x8xi1>, vector<2x8xi32>
    %24 = arith.addi %16, %23 : vector<2x8xi32>
    %25 = vector.broadcast %3 : vector<2x1xi32> to vector<2x8xi32>
    %26 = arith.cmpi slt, %4, %25 : vector<2x8xi32>
    %27 = arith.extui %26 : vector<2x8xi1> to vector<2x8xi32>
    %28 = arith.sitofp %27 : vector<2x8xi32> to vector<2x8xf32>
    %29 = arith.subi %24, %10 : vector<2x8xi32>
    %c1_i32_5 = arith.constant 1 : i32
    %30 = vector.broadcast %c1_i32_5 : i32 to vector<2x8xi32>
    %31 = arith.maxsi %29, %30 : vector<2x8xi32>
    %32 = arith.sitofp %31 : vector<2x8xi32> to vector<2x8xf32>
    %33 = tpu.iota {dimensions = array<i32: 2>} : vector<2x8x16xi32>
    %34 = vector.shape_cast %10 : vector<2x8xi32> to vector<2x8x1xi32>
    %35 = vector.broadcast %34 : vector<2x8x1xi32> to vector<2x8x16xi32>
    %36 = arith.subi %33, %35 : vector<2x8x16xi32>
    %37 = vector.shape_cast %29 : vector<2x8xi32> to vector<2x8x1xi32>
    %38 = vector.broadcast %37 : vector<2x8x1xi32> to vector<2x8x16xi32>
    %39 = arith.cmpi ult, %36, %38 : vector<2x8x16xi32>
    %40 = arith.extui %39 : vector<2x8x16xi1> to vector<2x8x16xi32>
    %41 = arith.sitofp %40 : vector<2x8x16xi32> to vector<2x8x16xf32>
    %42 = arith.truncf %41 : vector<2x8x16xf32> to vector<2x8x16xbf16>
    %c0_6 = arith.constant 0 : index
    %c0_7 = arith.constant 0 : index
    %c0_8 = arith.constant 0 : index
    %43 = vector.load %arg2[%c0_6, %c0_7, %c0_8] : memref<2x16x32xf32, #tpu.memory_space<vmem>>, vector<2x16x32xf32>
    %44 = arith.truncf %43 : vector<2x16x32xf32> to vector<2x16x32xbf16>
    "tpu.trace_start"() <{level = 10 : i32, message = "bcs,bsh->bch"}> : () -> ()
    %cst = arith.constant dense<0.000000e+00> : vector<2x8x32xf32>
    %45 = tpu.matmul %42, %44, %cst {dimension_numbers = #tpu.dot_dimension_numbers<[2], [1], [1], [2], [0, 0, 0, 1, 1, 2], [0], [0]>} : vector<2x8x16xbf16>, vector<2x16x32xbf16>, vector<2x8x32xf32> -> vector<2x8x32xf32>
    "tpu.trace_stop"() : () -> ()
    %46 = arith.divf %28, %32 : vector<2x8xf32>
    %47 = vector.shape_cast %46 : vector<2x8xf32> to vector<2x8x1xf32>
    %48 = vector.broadcast %47 : vector<2x8x1xf32> to vector<2x8x32xf32>
    %49 = arith.mulf %45, %48 : vector<2x8x32xf32>
    %50 = vector.shape_cast %49 : vector<2x8x32xf32> to vector<16x32xf32>
    %51 = arith.truncf %50 : vector<16x32xf32> to vector<16x32xbf16>
    %c0_9 = arith.constant 0 : index
    %c0_10 = arith.constant 0 : index
    %52 = vector.load %arg4[%c0_9, %c0_10] : memref<32x64xbf16, #tpu.memory_space<vmem>>, vector<32x64xbf16>
    %cst_11 = arith.constant dense<0.000000e+00> : vector<16x64xf32>
    %53 = tpu.matmul %51, %52, %cst_11 {dimension_numbers = #tpu.dot_dimension_numbers<[1], [0], [0], [1], [0, 0, 1, 1], [], []>} : vector<16x32xbf16>, vector<32x64xbf16>, vector<16x64xf32> -> vector<16x64xf32>
    %54 = vector.shape_cast %53 : vector<16x64xf32> to vector<2x8x64xf32>
    %c0_12 = arith.constant 0 : index
    %c0_13 = arith.constant 0 : index
    %c0_14 = arith.constant 0 : index
    %55 = vector.load %arg3[%c0_12, %c0_13, %c0_14] : memref<2x1x64xf32, #tpu.memory_space<vmem>>, vector<2x1x64xf32>
    %56 = vector.shape_cast %55 : vector<2x1x64xf32> to vector<2x64xf32>
    %57 = vector.shape_cast %28 : vector<2x8xf32> to vector<2x8x1xf32>
    %58 = vector.shape_cast %56 : vector<2x64xf32> to vector<2x1x64xf32>
    %59 = vector.broadcast %57 : vector<2x8x1xf32> to vector<2x8x64xf32>
    %60 = vector.broadcast %58 : vector<2x1x64xf32> to vector<2x8x64xf32>
    %61 = arith.mulf %59, %60 : vector<2x8x64xf32>
    %62 = arith.addf %54, %61 : vector<2x8x64xf32>
    %c0_15 = arith.constant 0 : index
    %c0_16 = arith.constant 0 : index
    %63 = vector.load %arg5[%c0_15, %c0_16] : memref<1x64xf32, #tpu.memory_space<vmem>>, vector<1x64xf32>
    %64 = vector.shape_cast %63 : vector<1x64xf32> to vector<1x1x64xf32>
    %65 = vector.broadcast %64 : vector<1x1x64xf32> to vector<2x8x64xf32>
    %66 = arith.addf %62, %65 : vector<2x8x64xf32>
    %67 = math.tanh %66 : vector<2x8x64xf32>
    %c0_17 = arith.constant 0 : index
    %c0_18 = arith.constant 0 : index
    %68 = vector.load %arg6[%c0_17, %c0_18] : memref<1x64xf32, #tpu.memory_space<vmem>>, vector<1x64xf32>
    %69 = vector.shape_cast %68 : vector<1x64xf32> to vector<1x1x64xf32>
    %70 = vector.broadcast %69 : vector<1x1x64xf32> to vector<2x8x64xf32>
    %71 = arith.mulf %67, %70 : vector<2x8x64xf32>
    %cst_19 = arith.constant dense<0.000000e+00> : vector<2x8xf32>
    %72 = vector.multi_reduction <add>, %71, %cst_19 [2] : vector<2x8x64xf32> to vector<2x8xf32>
    %c0_20 = arith.constant 0 : index
    %c0_21 = arith.constant 0 : index
    %73 = vector.load %arg7[%c0_20, %c0_21] : memref<1x1xf32, #tpu.memory_space<vmem>>, vector<1x1xf32>
    %74 = vector.broadcast %73 : vector<1x1xf32> to vector<2x8xf32>
    %75 = arith.addf %72, %74 : vector<2x8xf32>
    %c0_22 = arith.constant 0 : index
    %c0_23 = arith.constant 0 : index
    %c0_24 = arith.constant 0 : index
    %76 = vector.load %arg8[%c0_22, %c0_23, %c0_24] : memref<2x1x8xf32, #tpu.memory_space<vmem>>, vector<2x1x8xf32>
    %77 = vector.shape_cast %76 : vector<2x1x8xf32> to vector<2x8xf32>
    %78 = vector.shape_cast %75 : vector<2x8xf32> to vector<2x1x8xf32>
    tpu.vector_store %arg8[%c0_22, %c0_23, %c0_24], %78 {strides = array<i32>} : memref<2x1x8xf32, #tpu.memory_space<vmem>>, vector<2x1x8xf32>,
    return
  }
  func.func @transform_0(%arg0: i32) -> (i32, i32, i32) {
    %c0_i32 = arith.constant 0 : i32
    %c0_i32_0 = arith.constant 0 : i32
    %c0_i32_1 = arith.constant 0 : i32
    return %arg0, %c0_i32, %c0_i32_0 : i32, i32, i32
  }
  func.func @transform_1(%arg0: i32) -> (i32, i32, i32) {
    %c0_i32 = arith.constant 0 : i32
    %c0_i32_0 = arith.constant 0 : i32
    %c0_i32_1 = arith.constant 0 : i32
    return %arg0, %c0_i32, %c0_i32_0 : i32, i32, i32
  }
  func.func @transform_2(%arg0: i32) -> (i32, i32, i32) {
    %c0_i32 = arith.constant 0 : i32
    %c0_i32_0 = arith.constant 0 : i32
    %c0_i32_1 = arith.constant 0 : i32
    return %arg0, %c0_i32, %c0_i32_0 : i32, i32, i32
  }
  func.func @transform_3(%arg0: i32) -> (i32, i32) {
    %c0_i32 = arith.constant 0 : i32
    %c0_i32_0 = arith.constant 0 : i32
    %c0_i32_1 = arith.constant 0 : i32
    return %c0_i32, %c0_i32_0 : i32, i32
  }
  func.func @transform_4(%arg0: i32) -> (i32, i32) {
    %c0_i32 = arith.constant 0 : i32
    %c0_i32_0 = arith.constant 0 : i32
    %c0_i32_1 = arith.constant 0 : i32
    return %c0_i32, %c0_i32_0 : i32, i32
  }
  func.func @transform_5(%arg0: i32) -> (i32, i32) {
    %c0_i32 = arith.constant 0 : i32
    %c0_i32_0 = arith.constant 0 : i32
    %c0_i32_1 = arith.constant 0 : i32
    return %c0_i32, %c0_i32_0 : i32, i32
  }
  func.func @transform_6(%arg0: i32) -> (i32, i32) {
    %c0_i32 = arith.constant 0 : i32
    %c0_i32_0 = arith.constant 0 : i32
    %c0_i32_1 = arith.constant 0 : i32
    return %c0_i32, %c0_i32_0 : i32, i32
  }
  func.func @transform_7(%arg0: i32) -> (i32, i32, i32) {
    %c0_i32 = arith.constant 0 : i32
    %c0_i32_0 = arith.constant 0 : i32
    %c0_i32_1 = arith.constant 0 : i32
    return %arg0, %c0_i32, %c0_i32_0 : i32, i32, i32
  }
}

</mosaic_0001>

<llo_original>
// kernel: _forward_jit.1
$region0: #{_forward_jit.1}
  #allocation0 [shape = 'u32[]', space=smem, size = 0x4, offset = 0x4, fixed_abs, tag = 'smem constant byte address 0x4 - core index']
  #allocation1 [shape = 'u32[144,128]{1,0:T(1,128)}', space=vmem, size = 0x12000, scoped, tag = 'internal scratch']
  #allocation2 [shape = 'f32[1,1]{1,0:T(1,128)S(1)}', space=vmem, size = 0x200, scoped, tag = 'scoped memory for _forward_jit.1']
  %s0 = inlined_call_operand.vmem [shape: s32[4,1,10], index: 0, kind: input, shape index: {}]
  %s1 = inlined_call_operand.vmem [shape: f32[4,16,32], index: 1, kind: input, shape index: {}]
  %s2 = inlined_call_operand.vmem [shape: f32[4,1,64], index: 2, kind: input, shape index: {}]
  %s3 = inlined_call_operand.vmem [shape: bf16[32,64], index: 3, kind: input, shape index: {}]
  %s4 = inlined_call_operand.vmem [shape: f32[1,64], index: 4, kind: input, shape index: {}]
  %s5 = inlined_call_operand.vmem [shape: f32[1,64], index: 5, kind: input, shape index: {}]
  %s6 = inlined_call_operand.<no memory space> [shape: f32[1,1], index: 6, kind: input, shape index: {}]
  %s7 = inlined_call_operand.hbm [shape: f32[4,1,8], index: 7, kind: output, shape index: {}]
  %s8 = sld [smem:[#allocation0]]
  $region61: #{_forward_jit.1} parent=0
    _
  %s10 = ssub.s32 1, %s8
  %s11 = scalar_select 0, %s10, %s8
  %v12 = vstv %s6
  %13 = vst [vmem:[#allocation2] sm:$0x1] %v12
  $region1: #{_forward_jit.1} parent=0
    #allocation3 [shape = 'u8[2048]{0}', space=vmem, size = 0x800, scoped, tag = 'output window, operand 0']
    #allocation4 [shape = 's32[2]{0}', space=sflag, size = 0x8, scoped, tag = 'scoped memory for _forward_jit.1']
    %14 = vsyncpa [#allocation4], 0
    %s15 = scalar_lea.sflag [#allocation4], 1
    %16 = vsyncpa %s15, 0
    loop: start=0, step=1, limit=4
    $region2: #{_forward_jit.1} parent=1 // loop_pre_header
      _
    $region3: #{_forward_jit.1} parent=1 // loop_header
      %s18 = sphi 0, %s22
      %p19 = scmp.ge.s32.totalorder %s18, 4
      %s28 = sphi 0, %s30
      %s31 = sphi 0, %s28
      %s32 = sphi 0, %s31
      %s48 = sphi 0, %s32
      %s54 = sphi 0, %s56
      %s57 = sphi 0, %s54
      %s58 = sphi 0, %s57
      %s74 = sphi 0, %s58
      %s80 = sphi 0, %s82
      %s83 = sphi 0, %s80
      %s84 = sphi 0, %s83
      %s100 = sphi 0, %s84
      %s104 = sphi 0, %s104
      %s106 = sphi 0, %s104
      %s107 = sphi 0, %s106
      %s121 = sphi 0, %s107
      %s125 = sphi 0, %s125
      %s127 = sphi 0, %s125
      %s128 = sphi 0, %s127
      %s142 = sphi 0, %s128
      %s146 = sphi 0, %s146
      %s148 = sphi 0, %s146
      %s149 = sphi 0, %s148
      %s163 = sphi 0, %s149
      %s167 = sphi 0, %s167
      %s169 = sphi 0, %s167
      %s170 = sphi 0, %s169
      %s184 = sphi 0, %s170
      %s190 = sphi 0, %s192
      %s193 = sphi 0, %s190
      %s194 = sphi 0, %s193
      %s210 = sphi 0, %s194
    $region4: #{_forward_jit.1} parent=1 // loop_header_branch
      %21 = sbr.rel (%p19) target = $region8
    $region5: #{_forward_jit.1} parent=1 // loop_body
      %s23 = ssub.s32 %s18, 1
      %s24 = ssub.s32 %s18, 2
      %s25 = sadd.s32 %s18, 1
      %s26 = ssub.s32 %s18, %s25
      %p27 = scmp.eq.s32.totalorder %s26, 0
      %s29 = sadd.s32 %s28, 1
      %s30 = scalar_select %p27, %s28, %s29
      %p33 = pneg %p27
      %p34 = scmp.eq.s32.totalorder %s18, 1
      %p35 = por %p33, %p34
      %p36 = scmp.ne.s32.totalorder %s28, %s31
      %p37 = scmp.eq.s32.totalorder %s18, 0
      %p38 = por %p36, %p37
      %p39 = scmp.ne.s32.totalorder %s28, %s31
      %p40 = scmp.eq.s32.totalorder %s23, 1
      %p41 = por %p39, %p40
      %p42 = scmp.ne.s32.totalorder %s31, %s32
      %p43 = scmp.eq.s32.totalorder %s23, 0
      %p44 = por %p42, %p43
      %p45 = scmp.ne.s32.totalorder %s31, %s32
      %p46 = scmp.eq.s32.totalorder %s24, 1
      %p47 = por %p45, %p46
      %p49 = scmp.ne.s32.totalorder %s32, %s48
      %p50 = scmp.eq.s32.totalorder %s24, 0
      %p51 = por %p49, %p50
      %s52 = ssub.s32 %s18, %s25
      %p53 = scmp.eq.s32.totalorder %s52, 0
      %s55 = sadd.s32 %s54, 1
      %s56 = scalar_select %p53, %s54, %s55
      %p59 = pneg %p53
      %p60 = scmp.eq.s32.totalorder %s18, 1
      %p61 = por %p59, %p60
      %p62 = scmp.ne.s32.totalorder %s54, %s57
      %p63 = scmp.eq.s32.totalorder %s18, 0
      %p64 = por %p62, %p63
      %p65 = scmp.ne.s32.totalorder %s54, %s57
      %p66 = scmp.eq.s32.totalorder %s23, 1
      %p67 = por %p65, %p66
      %p68 = scmp.ne.s32.totalorder %s57, %s58
      %p69 = scmp.eq.s32.totalorder %s23, 0
      %p70 = por %p68, %p69
      %p71 = scmp.ne.s32.totalorder %s57, %s58
      %p72 = scmp.eq.s32.totalorder %s24, 1
      %p73 = por %p71, %p72
      %p75 = scmp.ne.s32.totalorder %s58, %s74
      %p76 = scmp.eq.s32.totalorder %s24, 0
      %p77 = por %p75, %p76
      %s78 = ssub.s32 %s18, %s25
      %p79 = scmp.eq.s32.totalorder %s78, 0
      %s81 = sadd.s32 %s80, 1
      %s82 = scalar_select %p79, %s80, %s81
      %p85 = pneg %p79
      %p86 = scmp.eq.s32.totalorder %s18, 1
      %p87 = por %p85, %p86
      %p88 = scmp.ne.s32.totalorder %s80, %s83
      %p89 = scmp.eq.s32.totalorder %s18, 0
      %p90 = por %p88, %p89
      %p91 = scmp.ne.s32.totalorder %s80, %s83
      %p92 = scmp.eq.s32.totalorder %s23, 1
      %p93 = por %p91, %p92
      %p94 = scmp.ne.s32.totalorder %s83, %s84
      %p95 = scmp.eq.s32.totalorder %s23, 0
      %p96 = por %p94, %p95
      %p97 = scmp.ne.s32.totalorder %s83, %s84
      %p98 = scmp.eq.s32.totalorder %s24, 1
      %p99 = por %p97, %p98
      %p101 = scmp.ne.s32.totalorder %s84, %s100
      %p102 = scmp.eq.s32.totalorder %s24, 0
      %p103 = por %p101, %p102
      %s105 = sadd.s32 %s104, 1
      %p108 = scmp.eq.s32.totalorder %s18, 1
      %p109 = scmp.ne.s32.totalorder %s104, %s106
      %p110 = scmp.eq.s32.totalorder %s18, 0
      %p111 = por %p109, %p110
      %p112 = scmp.ne.s32.totalorder %s104, %s106
      %p113 = scmp.eq.s32.totalorder %s23, 1
      %p114 = por %p112, %p113
      %p115 = scmp.ne.s32.totalorder %s106, %s107
      %p116 = scmp.eq.s32.totalorder %s23, 0
      %p117 = por %p115, %p116
      %p118 = scmp.ne.s32.totalorder %s106, %s107
      %p119 = scmp.eq.s32.totalorder %s24, 1
      %p120 = por %p118, %p119
      %p122 = scmp.ne.s32.totalorder %s107, %s121
      %p123 = scmp.eq.s32.totalorder %s24, 0
      %p124 = por %p122, %p123
      %s126 = sadd.s32 %s125, 1
      %p129 = scmp.eq.s32.totalorder %s18, 1
      %p130 = scmp.ne.s32.totalorder %s125, %s127
      %p131 = scmp.eq.s32.totalorder %s18, 0
      %p132 = por %p130, %p131
      %p133 = scmp.ne.s32.totalorder %s125, %s127
      %p134 = scmp.eq.s32.totalorder %s23, 1
      %p135 = por %p133, %p134
      %p136 = scmp.ne.s32.totalorder %s127, %s128
      %p137 = scmp.eq.s32.totalorder %s23, 0
      %p138 = por %p136, %p137
      %p139 = scmp.ne.s32.totalorder %s127, %s128
      %p140 = scmp.eq.s32.totalorder %s24, 1
      %p141 = por %p139, %p140
      %p143 = scmp.ne.s32.totalorder %s128, %s142
      %p144 = scmp.eq.s32.totalorder %s24, 0
      %p145 = por %p143, %p144
      %s147 = sadd.s32 %s146, 1
      %p150 = scmp.eq.s32.totalorder %s18, 1
      %p151 = scmp.ne.s32.totalorder %s146, %s148
      %p152 = scmp.eq.s32.totalorder %s18, 0
      %p153 = por %p151, %p152
      %p154 = scmp.ne.s32.totalorder %s146, %s148
      %p155 = scmp.eq.s32.totalorder %s23, 1
      %p156 = por %p154, %p155
      %p157 = scmp.ne.s32.totalorder %s148, %s149
      %p158 = scmp.eq.s32.totalorder %s23, 0
      %p159 = por %p157, %p158
      %p160 = scmp.ne.s32.totalorder %s148, %s149
      %p161 = scmp.eq.s32.totalorder %s24, 1
      %p162 = por %p160, %p161
      %p164 = scmp.ne.s32.totalorder %s149, %s163
      %p165 = scmp.eq.s32.totalorder %s24, 0
      %p166 = por %p164, %p165
      %s168 = sadd.s32 %s167, 1
      %p171 = scmp.eq.s32.totalorder %s18, 1
      %p172 = scmp.ne.s32.totalorder %s167, %s169
      %p173 = scmp.eq.s32.totalorder %s18, 0
      %p174 = por %p172, %p173
      %p175 = scmp.ne.s32.totalorder %s167, %s169
      %p176 = scmp.eq.s32.totalorder %s23, 1
      %p177 = por %p175, %p176
      %p178 = scmp.ne.s32.totalorder %s169, %s170
      %p179 = scmp.eq.s32.totalorder %s23, 0
      %p180 = por %p178, %p179
      %p181 = scmp.ne.s32.totalorder %s169, %s170
      %p182 = scmp.eq.s32.totalorder %s24, 1
      %p183 = por %p181, %p182
      %p185 = scmp.ne.s32.totalorder %s170, %s184
      %p186 = scmp.eq.s32.totalorder %s24, 0
      %p187 = por %p185, %p186
      %s188 = ssub.s32 %s18, %s25
      %p189 = scmp.eq.s32.totalorder %s188, 0
      %s191 = sadd.s32 %s190, 1
      %s192 = scalar_select %p189, %s190, %s191
      %p195 = pneg %p189
      %p196 = scmp.eq.s32.totalorder %s18, 1
      %p197 = por %p195, %p196
      %p198 = scmp.ne.s32.totalorder %s190, %s193
      %p199 = scmp.eq.s32.totalorder %s18, 0
      %p200 = por %p198, %p199
      %p201 = scmp.ne.s32.totalorder %s190, %s193
      %p202 = scmp.eq.s32.totalorder %s23, 1
      %p203 = por %p201, %p202
      %p204 = scmp.ne.s32.totalorder %s193, %s194
      %p205 = scmp.eq.s32.totalorder %s23, 0
      %p206 = por %p204, %p205
      %p207 = scmp.ne.s32.totalorder %s193, %s194
      %p208 = scmp.eq.s32.totalorder %s24, 1
      %p209 = por %p207, %p208
      %p211 = scmp.ne.s32.totalorder %s194, %s210
      %p212 = scmp.eq.s32.totalorder %s24, 0
      %p213 = por %p211, %p212
      %p214 = scmp.le.s32.totalorder 1, %s18
      %p215 = scmp.lt.s32.totalorder %s18, 3
      %p216 = pnand %p214, %p215
      %p217 = pneg %p216
      // Predicated region
      $region9: #{_forward_jit.1} parent=5 // pred_check
        _
      $region10: #{_forward_jit.1} parent=5 // pred_check_branch
        %219 = sbr.rel (%p216) target = $region12
      $region11: #{_forward_jit.1} parent=5 // pred_region
        %s220 = ssub.s32 %s18, 1
        // Predicated region
        $region13: #{_forward_jit.1} parent=11 // pred_check
          %p221 = pneg %p117
        $region14: #{_forward_jit.1} parent=11 // pred_check_branch
          %223 = sbr.rel (%p221) target = $region16
        $region15: #{_forward_jit.1} parent=11 // pred_region
          _
        $region16: #{_forward_jit.1} parent=11 // pred_fallthru
          _
        // Predicated region
        $region17: #{_forward_jit.1} parent=11 // pred_check
          %p224 = pneg %p138
        $region18: #{_forward_jit.1} parent=11 // pred_check_branch
          %226 = sbr.rel (%p224) target = $region20
        $region19: #{_forward_jit.1} parent=11 // pred_region
          _
        $region20: #{_forward_jit.1} parent=11 // pred_fallthru
          _
        // Predicated region
        $region21: #{_forward_jit.1} parent=11 // pred_check
          %p227 = pneg %p159
        $region22: #{_forward_jit.1} parent=11 // pred_check_branch
          %229 = sbr.rel (%p227) target = $region24
        $region23: #{_forward_jit.1} parent=11 // pred_region
          _
        $region24: #{_forward_jit.1} parent=11 // pred_fallthru
          _
        // Predicated region
        $region25: #{_forward_jit.1} parent=11 // pred_check
          %p230 = pneg %p180
        $region26: #{_forward_jit.1} parent=11 // pred_check_branch
          %232 = sbr.rel (%p230) target = $region28
        $region27: #{_forward_jit.1} parent=11 // pred_region
          _
        $region28: #{_forward_jit.1} parent=11 // pred_fallthru
          _
      $region12: #{_forward_jit.1} parent=5 // pred_fallthru
        _
      %p233 = scmp.lt.s32.totalorder %s18, 2
      // Predicated region
      $region29: #{_forward_jit.1} parent=5 // pred_check
        %p234 = pneg %p233
      $region30: #{_forward_jit.1} parent=5 // pred_check_branch
        %236 = sbr.rel (%p234) target = $region32
      $region31: #{_forward_jit.1} parent=5 // pred_region
        // Predicated region
        $region33: #{_forward_jit.1} parent=31 // pred_check
          %p237 = pneg %p38
        $region34: #{_forward_jit.1} parent=31 // pred_check_branch
          %239 = sbr.rel (%p237) target = $region36
        $region35: #{_forward_jit.1} parent=31 // pred_region
          %s240 = smul.u32 2, %s18
          %p241 = scmp.lt.s32.totalorder %s240, 3
          %s242 = scalar_select %p241, %s240, 3
          %s243 = scalar_lea.vmem %s0, %s242
          %s244 = smul.u32 2, %s18
        $region36: #{_forward_jit.1} parent=31 // pred_fallthru
          _
        // Predicated region
        $region37: #{_forward_jit.1} parent=31 // pred_check
          %p245 = pneg %p64
        $region38: #{_forward_jit.1} parent=31 // pred_check_branch
          %247 = sbr.rel (%p245) target = $region40
        $region39: #{_forward_jit.1} parent=31 // pred_region
          %s248 = smul.u32 2, %s18
          %p249 = scmp.lt.s32.totalorder %s248, 3
          %s250 = scalar_select %p249, %s248, 3
          %s251 = smul.addr %s250, 2
          %s252 = smul.addr %s251, 8
          %s253 = scalar_lea.vmem %s1, %s252
          %s254 = smul.u32 2, %s18
        $region40: #{_forward_jit.1} parent=31 // pred_fallthru
          _
        // Predicated region
        $region41: #{_forward_jit.1} parent=31 // pred_check
          %p255 = pneg %p90
        $region42: #{_forward_jit.1} parent=31 // pred_check_branch
          %257 = sbr.rel (%p255) target = $region44
        $region43: #{_forward_jit.1} parent=31 // pred_region
          %s258 = smul.u32 2, %s18
          %p259 = scmp.lt.s32.totalorder %s258, 3
          %s260 = scalar_select %p259, %s258, 3
          %s261 = scalar_lea.vmem %s2, %s260
          %s262 = smul.u32 2, %s18
        $region44: #{_forward_jit.1} parent=31 // pred_fallthru
          _
      $region32: #{_forward_jit.1} parent=5 // pred_fallthru
        _
      %p263 = scmp.le.s32.totalorder 1, %s18
      %p264 = scmp.lt.s32.totalorder %s18, 3
      %p265 = pnand %p263, %p264
      %p266 = pneg %p265
      // Predicated region
      $region45: #{_forward_jit.1} parent=5 // pred_check
        _
      $region46: #{_forward_jit.1} parent=5 // pred_check_branch
        %268 = sbr.rel (%p265) target = $region48
      $region47: #{_forward_jit.1} parent=5 // pred_region
        %s269 = ssub.s32 %s18, 1
        %s270 = smul.u32 2, %s23
        %p271 = scmp.lt.s32.totalorder %s270, 3
        %s272 = scalar_select %p271, %s270, 3
        %s273 = scalar_lea.vmem %s0, %s272
        %p274 = pneg %p44
        %p275 = pneg %p41
        %s276 = smul.u32 2, %s23
        %p277 = scmp.lt.s32.totalorder %s276, 3
        %s278 = scalar_select %p277, %s276, 3
        %s279 = smul.addr %s278, 2
        %s280 = smul.addr %s279, 8
        %s281 = scalar_lea.vmem %s1, %s280
        %p282 = pneg %p70
        %p283 = pneg %p67
        %s284 = smul.u32 2, %s23
        %p285 = scmp.lt.s32.totalorder %s284, 3
        %s286 = scalar_select %p285, %s284, 3
        %s287 = scalar_lea.vmem %s2, %s286
        %p288 = pneg %p96
        %p289 = pneg %p93
        %p290 = pneg %p117
        %p291 = pneg %p114
        %p292 = pneg %p138
        %p293 = pneg %p135
        %p294 = pneg %p159
        %p295 = pneg %p156
        %p296 = pneg %p180
        %p297 = pneg %p177
        %p298 = pneg %p206
        %p299 = pneg %p203
        %s300 = sand.u32 %s193, 1
        %s301 = scalar_lea.sflag [#allocation4], %s300
        %s302 = sand.u32 %s193, 1
        %s303 = smul.addr %s302, 2
        %s304 = scalar_lea.vmem [#allocation3], %s303
        %s305 = smul.u32 2, %s23
        %p306 = scmp.lt.s32.totalorder %s305, 3
        %s307 = scalar_select %p306, %s305, 3
        %s308 = scalar_lea.vmem %s0, %s307
        %s309 = smul.u32 2, %s23
        %s310 = smul.u32 2, %s23
        %p311 = scmp.lt.s32.totalorder %s310, 3
        %s312 = scalar_select %p311, %s310, 3
        %s313 = smul.addr %s312, 2
        %s314 = smul.addr %s313, 8
        %s315 = scalar_lea.vmem %s1, %s314
        %s316 = smul.u32 2, %s23
        %s317 = smul.u32 2, %s23
        %p318 = scmp.lt.s32.totalorder %s317, 3
        %s319 = scalar_select %p318, %s317, 3
        %s320 = scalar_lea.vmem %s2, %s319
        %s321 = smul.u32 2, %s23
        %s322 = smul.u32 2, %s23
        %v324 = vld [vmem:[%s308] sm:$0x1]
        %v325 = vld [vmem:[%s308 + $0x1] sm:$0x1]
        %v326 = vlaneseq
        %v327 = vand.u32 %v326, 127
        %v328 = vadd.s32 %v324, 1
        %v329 = vadd.s32 %v325, 1
        %330 = vset.pattern.permute.xlu0 0
        %331 = vperm.xlu0 %330, %v324
        %v332 = vpop.permute.xlu0 %331
        %v333 = vlaneseq
        %v334 = vshrl.u32 %v333, 7
        %v335 = vsub.s32 0, %v334
        %v336 = vrot.slane %v332, %v335
        %337 = vset.pattern.permute.xlu0 0
        %338 = vperm.xlu0 %337, %v325
        %v339 = vpop.permute.xlu0 %338
        %v340 = vlaneseq
        %v341 = vshrl.u32 %v340, 7
        %v342 = vsub.s32 0, %v341
        %v343 = vrot.slane %v339, %v342
        %v344 = vsub.s32 %v328, %v336
        %v345 = vsub.s32 %v329, %v343
        %v346 = vsub.s32 %v324, 1
        %v347 = vsub.s32 %v325, 1
        %348 = vset.pattern.permute.xlu0 9
        %349 = vperm.xlu0 %348, %v346
        %v350 = vpop.permute.xlu0 %349
        %v351 = vlaneseq
        %v352 = vshrl.u32 %v351, 7
        %v353 = vsub.s32 0, %v352
        %v354 = vrot.slane %v350, %v353
        %355 = vset.pattern.permute.xlu0 9
        %356 = vperm.xlu0 %355, %v347
        %v357 = vpop.permute.xlu0 %356
        %v358 = vlaneseq
        %v359 = vshrl.u32 %v358, 7
        %v360 = vsub.s32 0, %v359
        %v361 = vrot.slane %v357, %v360
        %v362 = vcombine.low %v354, %v361
        %v364 = vunpack.c.l.s4 1966171168
        %v365 = vunpack.c.0.s8 %v364
        %v366 = vlaneseq
        %v367 = vshrl.u32 %v366, 7
        %v368 = vsub.s32 %v365, %v367
        %v369 = vrot.slane %v362, %v368
        %v371 = vunpack.c.l.s4 1966171168
        %v372 = vunpack.c.0.s8 %v371
        %v373 = vlaneseq
        %v374 = vshrl.u32 %v373, 7
        %v375 = vsub.s32 %v372, %v374
        %v376 = vrot.slane %v369, %v375
        %vm377 = vcmp.eq.s32.totalorder %v327, %v376
        %v378 = vsel %vm377, 1, 0
        %v380 = vunpack.c.l.s4 1966171168
        %v381 = vunpack.c.0.s8 %v380
        %v382 = vlaneseq
        %v383 = vshrl.u32 %v382, 7
        %v384 = vsub.s32 %v381, %v383
        %v385 = vrot.slane %v378, %v384
        %v386 = vcombine.high %v385, %v385
        %v388 = vunpack.c.l.s4 1966171168
        %v389 = vunpack.c.0.s8 %v388
        %v390 = vlaneseq
        %v391 = vshrl.u32 %v390, 7
        %v392 = vsub.s32 %v389, %v391
        %v393 = vrot.slane %v385, %v392
        %v395 = vunpack.c.l.s4 1966171168
        %v396 = vunpack.c.0.s8 %v395
        %v397 = vlaneseq
        %v398 = vshrl.u32 %v397, 7
        %v399 = vsub.s32 %v396, %v398
        %v400 = vrot.slane %v386, %v399
        %401 = vrot.lane.b32.xlu0 %v393, 1
        %v402 = vpop.permute.xlu0 %401
        %403 = vrot.lane.b32.xlu0 %v400, 1
        %v404 = vpop.permute.xlu0 %403
        %v405 = vadd.s32 %v344, %v402
        %v406 = vadd.s32 %v345, %v404
        %407 = vset.pattern.permute.xlu0 9
        %408 = vperm.xlu0 %407, %v324
        %v409 = vpop.permute.xlu0 %408
        %v410 = vlaneseq
        %v411 = vshrl.u32 %v410, 7
        %v412 = vsub.s32 0, %v411
        %v413 = vrot.slane %v409, %v412
        %414 = vset.pattern.permute.xlu0 9
        %415 = vperm.xlu0 %414, %v325
        %v416 = vpop.permute.xlu0 %415
        %v417 = vlaneseq
        %v418 = vshrl.u32 %v417, 7
        %v419 = vsub.s32 0, %v418
        %v420 = vrot.slane %v416, %v419
        %v421 = vcombine.low %v413, %v420
        %v423 = vunpack.c.l.s4 1966171168
        %v424 = vunpack.c.0.s8 %v423
        %v425 = vlaneseq
        %v426 = vshrl.u32 %v425, 7
        %v427 = vsub.s32 %v424, %v426
        %v428 = vrot.slane %v421, %v427
        %v430 = vunpack.c.l.s4 1966171168
        %v431 = vunpack.c.0.s8 %v430
        %v432 = vlaneseq
        %v433 = vshrl.u32 %v432, 7
        %v434 = vsub.s32 %v431, %v433
        %v435 = vrot.slane %v428, %v434
        %vm436 = vcmp.lt.s32.totalorder %v327, %v435
        %v437 = vsel %vm436, 1, 0
        %v438 = vcvt.s32.f32 %v437
        %439 = vrot.lane.b32.xlu0 %v344, 1
        %v440 = vpop.permute.xlu0 %439
        %441 = vrot.lane.b32.xlu0 %v345, 1
        %v442 = vpop.permute.xlu0 %441
        %v443 = vsub.s32 %v405, %v440
        %v444 = vsub.s32 %v406, %v442
        %vm445 = vcmp.gt.s32.totalorder %v443, 1
        %v446 = vsel %vm445, %v443, 1
        %vm447 = vcmp.gt.s32.totalorder %v444, 1
        %v448 = vsel %vm447, %v444, 1
        %v449 = vcvt.s32.f32 %v446
        %v450 = vcvt.s32.f32 %v448
        %v451 = vlaneseq
        %v452 = vshrl.u32 %v451, 7
        %v453 = vsub.s32 0, %v452
        %v454 = vrot.slane %v344, %v453
        %456 = vbcast.lane.b32.xlu0 %v454, 256
        %v457 = vpop.permute.xlu0 %456
        %v458 = vlaneseq
        %v459 = vshrl.u32 %v458, 7
        %v460 = vsub.s32 0, %v459
        %v461 = vrot.slane %v345, %v460
        %463 = vbcast.lane.b32.xlu0 %v461, 256
        %v464 = vpop.permute.xlu0 %463
        %v465 = vsub.s32 %v327, %v457
        %v466 = vsub.s32 %v327, %v464
        %v467 = vlaneseq
        %v468 = vshrl.u32 %v467, 7
        %v469 = vsub.s32 0, %v468
        %v470 = vrot.slane %v443, %v469
        %s472 = sor.u32 256, 1
        %473 = vbcast.lane.b32.xlu0 %v470, %s472
        %v474 = vpop.permute.xlu0 %473
        %v475 = vlaneseq
        %v476 = vshrl.u32 %v475, 7
        %v477 = vsub.s32 0, %v476
        %v478 = vrot.slane %v444, %v477
        %s480 = sor.u32 256, 1
        %481 = vbcast.lane.b32.xlu0 %v478, %s480
        %v482 = vpop.permute.xlu0 %481
        %vm483 = vcmp.lt.u32.totalorder %v465, %v474
        %vm484 = vcmp.lt.u32.totalorder %v466, %v482
        %v485 = vsel %vm483, 1, 0
        %v486 = vsel %vm484, 1, 0
        %v487 = vcvt.s32.f32 %v485
        %v488 = vcvt.s32.f32 %v486
        %v489 = vpack.c.bf16 %v487, %v487
        %v490 = vpack.c.bf16 %v488, %v488
        %v491 = vld [vmem:[%s315] sm:$0xff]
        %v492 = vld [vmem:[%s315 + $0x8] sm:$0xff]
        %v493 = vld [vmem:[%s315 + $0x10] sm:$0xff]
        %v494 = vld [vmem:[%s315 + $0x18] sm:$0xff]
        %v495 = vpack.c.bf16 %v492, %v491
        %v496 = vpack.c.bf16 %v494, %v493
        %vm497 = vcmask 130048
        %v499 = vsel %vm497, %v489, 0
        %501 = vmatprep.subr.bf16.mxu0 0
        %502 = vmatpush1.bf16.msra.mxu0 %v495
        %503 = vmatprep.subr.bf16.mxu0 0
        %504 = vmatpush1.bf16.msra.mxu0 0
        %505 = vmatprep.subr.bf16.mxu0 0
        %506 = vmatpush1.bf16.msra.mxu0 0
        %507 = vmatprep.subr.bf16.mxu0 0
        %508 = vmatpush1.bf16.msra.mxu0 0
        %509 = vmatprep.subr.bf16.mxu0 0
        %510 = vmatpush1.bf16.msra.mxu0 0
        %511 = vmatprep.subr.bf16.mxu0 0
        %512 = vmatpush1.bf16.msra.mxu0 0
        %513 = vmatprep.subr.bf16.mxu0 0
        %514 = vmatpush1.bf16.msra.mxu0 0
        %515 = vmatprep.subr.bf16.mxu0 0
        %516 = vmatpush1.bf16.msra.mxu0 0
        %517 = vmatprep.subr.bf16.mxu0 0
        %518 = vmatpush1.bf16.msra.mxu0 0
        %519 = vmatprep.subr.bf16.mxu0 0
        %520 = vmatpush1.bf16.msra.mxu0 0
        %521 = vmatprep.subr.bf16.mxu0 0
        %522 = vmatpush1.bf16.msra.mxu0 0
        %523 = vmatprep.subr.bf16.mxu0 0
        %524 = vmatpush1.bf16.msra.mxu0 0
        %525 = vmatprep.subr.bf16.mxu0 0
        %526 = vmatpush1.bf16.msra.mxu0 0
        %527 = vmatprep.subr.bf16.mxu0 0
        %528 = vmatpush1.bf16.msra.mxu0 0
        %529 = vmatprep.subr.bf16.mxu0 0
        %530 = vmatpush1.bf16.msra.mxu0 0
        %531 = vmatprep.subr.bf16.mxu0 0
        %532 = vmatpush1.bf16.msra.mxu0 0
        %533 = vmatprep.mubr.bf16.mxu0 0
        %534 = vmatmul.mubr.bf16.gmra.mrb[0].mxu0 %v499
        %v535 = vpop.f32.mrb[0].mxu0
        %v536 = vadd.f32 0.0, %v535
        %v537 = vpop.f32.mrb[0].mxu0
        %v538 = vpop.f32.mrb[0].mxu0
        %v539 = vpop.f32.mrb[0].mxu0
        %540 = vdwg.mxu0
        %v542 = vsel %vm497, %v490, 0
        %544 = vmatprep.subr.bf16.mxu0 0
        %545 = vmatpush1.bf16.msra.mxu0 %v496
        %546 = vmatprep.subr.bf16.mxu0 0
        %547 = vmatpush1.bf16.msra.mxu0 0
        %548 = vmatprep.subr.bf16.mxu0 0
        %549 = vmatpush1.bf16.msra.mxu0 0
        %550 = vmatprep.subr.bf16.mxu0 0
        %551 = vmatpush1.bf16.msra.mxu0 0
        %552 = vmatprep.subr.bf16.mxu0 0
        %553 = vmatpush1.bf16.msra.mxu0 0
        %554 = vmatprep.subr.bf16.mxu0 0
        %555 = vmatpush1.bf16.msra.mxu0 0
        %556 = vmatprep.subr.bf16.mxu0 0
        %557 = vmatpush1.bf16.msra.mxu0 0
        %558 = vmatprep.subr.bf16.mxu0 0
        %559 = vmatpush1.bf16.msra.mxu0 0
        %560 = vmatprep.subr.bf16.mxu0 0
        %561 = vmatpush1.bf16.msra.mxu0 0
        %562 = vmatprep.subr.bf16.mxu0 0
        %563 = vmatpush1.bf16.msra.mxu0 0
        %564 = vmatprep.subr.bf16.mxu0 0
        %565 = vmatpush1.bf16.msra.mxu0 0
        %566 = vmatprep.subr.bf16.mxu0 0
        %567 = vmatpush1.bf16.msra.mxu0 0
        %568 = vmatprep.subr.bf16.mxu0 0
        %569 = vmatpush1.bf16.msra.mxu0 0
        %570 = vmatprep.subr.bf16.mxu0 0
        %571 = vmatpush1.bf16.msra.mxu0 0
        %572 = vmatprep.subr.bf16.mxu0 0
        %573 = vmatpush1.bf16.msra.mxu0 0
        %574 = vmatprep.subr.bf16.mxu0 0
        %575 = vmatpush1.bf16.msra.mxu0 0
        %576 = vmatprep.mubr.bf16.mxu0 0
        %577 = vmatmul.mubr.bf16.gmra.mrb[0].mxu0 %v542
        %v578 = vpop.f32.mrb[0].mxu0
        %v579 = vadd.f32 0.0, %v578
        %v580 = vpop.f32.mrb[0].mxu0
        %v581 = vpop.f32.mrb[0].mxu0
        %v582 = vpop.f32.mrb[0].mxu0
        %583 = vdwg.mxu0
        %v586 = vcombine.low %v449, %v450
        %v588 = vunpack.c.l.s4 1966171168
        %v589 = vunpack.c.0.s8 %v588
        %v590 = vlaneseq
        %v591 = vshrl.u32 %v590, 7
        %v592 = vsub.s32 %v589, %v591
        %v593 = vrot.slane %v586, %v592
        %v595 = vunpack.c.l.s4 1966171168
        %v596 = vunpack.c.0.s8 %v595
        %v597 = vlaneseq
        %v598 = vshrl.u32 %v597, 7
        %v599 = vsub.s32 %v596, %v598
        %v600 = vrot.slane %v593, %v599
        %601 = vrot.lane.b32.xlu0 %v600, 127
        %v602 = vpop.permute.xlu0 %601
        %v604 = vrcp.pop %v602
        %v605 = vmul.f32 %v438, %v604
        %v606 = vlaneseq
        %v607 = vshrl.u32 %v606, 7
        %v608 = vsub.s32 0, %v607
        %v609 = vrot.slane %v605, %v608
        %611 = vbcast.lane.b32.xlu0 %v609, 256
        %v612 = vpop.permute.xlu0 %611
        %v613 = vlaneseq
        %v614 = vshrl.u32 %v613, 7
        %v615 = vsub.s32 1, %v614
        %v616 = vrot.slane %v605, %v615
        %618 = vbcast.lane.b32.xlu0 %v616, 256
        %v619 = vpop.permute.xlu0 %618
        %v620 = vmul.f32 %v536, %v612
        %v621 = vmul.f32 %v579, %v619
        %v622 = vpack.c.bf16 %v621, %v620
        %v623 = vld [vmem:[%s3] sm:$0xf]
        %v624 = vld [vmem:[%s3 + $0x4] sm:$0xf]
        %v625 = vld [vmem:[%s3 + $0x8] sm:$0xf]
        %v626 = vld [vmem:[%s3 + $0xc] sm:$0xf]
        %v631 = vunpack.c.l.b16 %v623
        %v632 = vunpack.c.l.b16 %v624
        %v633 = vunpack.c.l.b16 %v625
        %v634 = vunpack.c.l.b16 %v626
        %v635 = vpack.c.b16 %v632, %v631
        %v636 = vpack.c.b16 %v634, %v633
        %vm639 = vcmask 261120
        %v641 = vsel %vm639, %v622, 0
        %643 = vmatprep.subr.bf16.mxu0 0
        %644 = vmatpush1.bf16.msra.mxu0 %v635
        %645 = vmatprep.subr.bf16.mxu0 0
        %646 = vmatpush1.bf16.msra.mxu0 %v636
        %647 = vmatprep.subr.bf16.mxu0 0
        %648 = vmatpush1.bf16.msra.mxu0 0
        %649 = vmatprep.subr.bf16.mxu0 0
        %650 = vmatpush1.bf16.msra.mxu0 0
        %651 = vmatprep.subr.bf16.mxu0 0
        %652 = vmatpush1.bf16.msra.mxu0 0
        %653 = vmatprep.subr.bf16.mxu0 0
        %654 = vmatpush1.bf16.msra.mxu0 0
        %655 = vmatprep.subr.bf16.mxu0 0
        %656 = vmatpush1.bf16.msra.mxu0 0
        %657 = vmatprep.subr.bf16.mxu0 0
        %658 = vmatpush1.bf16.msra.mxu0 0
        %659 = vmatprep.subr.bf16.mxu0 0
        %660 = vmatpush1.bf16.msra.mxu0 0
        %661 = vmatprep.subr.bf16.mxu0 0
        %662 = vmatpush1.bf16.msra.mxu0 0
        %663 = vmatprep.subr.bf16.mxu0 0
        %664 = vmatpush1.bf16.msra.mxu0 0
        %665 = vmatprep.subr.bf16.mxu0 0
        %666 = vmatpush1.bf16.msra.mxu0 0
        %667 = vmatprep.subr.bf16.mxu0 0
        %668 = vmatpush1.bf16.msra.mxu0 0
        %669 = vmatprep.subr.bf16.mxu0 0
        %670 = vmatpush1.bf16.msra.mxu0 0
        %671 = vmatprep.subr.bf16.mxu0 0
        %672 = vmatpush1.bf16.msra.mxu0 0
        %673 = vmatprep.subr.bf16.mxu0 0
        %674 = vmatpush1.bf16.msra.mxu0 0
        %675 = vmatprep.mubr.bf16.mxu0 0
        %676 = vmatmul.mubr.bf16.gmra.mrb[0].mxu0 %v641
        %v677 = vpop.f32.mrb[0].mxu0
        %v678 = vadd.f32 0.0, %v677
        %v679 = vpop.f32.mrb[0].mxu0
        %v680 = vpop.f32.mrb[0].mxu0
        %v681 = vadd.f32 0.0, %v680
        %v682 = vpop.f32.mrb[0].mxu0
        %683 = vdwg.mxu0
        %v684 = vld [vmem:[%s320] sm:$0x1]
        %v685 = vld [vmem:[%s320 + $0x1] sm:$0x1]
        %v686 = vlaneseq
        %v687 = vshrl.u32 %v686, 7
        %v688 = vsub.s32 0, %v687
        %v689 = vrot.slane %v438, %v688
        %691 = vbcast.lane.b32.xlu0 %v689, 256
        %v692 = vpop.permute.xlu0 %691
        %v693 = vlaneseq
        %v694 = vshrl.u32 %v693, 7
        %v695 = vsub.s32 1, %v694
        %v696 = vrot.slane %v438, %v695
        %698 = vbcast.lane.b32.xlu0 %v696, 256
        %v699 = vpop.permute.xlu0 %698
        %v702 = vlaneseq
        %v703 = vshrl.u32 %v702, 7
        %v704 = vsub.s32 0, %v703
        %v705 = vrot.slane %v684, %v704
        %v706 = vlaneseq
        %v707 = vshrl.u32 %v706, 7
        %v708 = vsub.s32 0, %v707
        %v709 = vrot.slane %v685, %v708
        %v712 = vmul.f32 %v692, %v705
        %v713 = vmul.f32 %v699, %v709
        %v714 = vadd.f32 %v678, %v712
        %v715 = vadd.f32 %v681, %v713
        %v716 = vld [vmem:[%s4] sm:$0x1]
        %v718 = vlaneseq
        %v719 = vshrl.u32 %v718, 7
        %v720 = vsub.s32 0, %v719
        %v721 = vrot.slane %v716, %v720
        %v723 = vadd.f32 %v714, %v721
        %v724 = vadd.f32 %v715, %v721
        %v725 = vtanh.pop %v723
        %v726 = vtanh.pop %v724
        %v727 = vld [vmem:[%s5] sm:$0x1]
        %v729 = vlaneseq
        %v730 = vshrl.u32 %v729, 7
        %v731 = vsub.s32 0, %v730
        %v732 = vrot.slane %v727, %v731
        %v734 = vmul.f32 %v725, %v732
        %v735 = vmul.f32 %v726, %v732
        %vm736 = vcmask 523264
        %v737 = vsel %vm736, %v734, 0.0
        %738 = vadd.xlane.f32.xlu0 %v737
        %v739 = vpop.xlane.xlu0 %738
        %v740 = vsel %vm736, %v735, 0.0
        %741 = vadd.xlane.f32.xlu0 %v740
        %v742 = vpop.xlane.xlu0 %741
        %v743 = vld [vmem:[#allocation2] sm:$0x1]
        %v745 = vlaneseq
        %v746 = vshrl.u32 %v745, 7
        %v747 = vsub.s32 0, %v746
        %v748 = vrot.slane %v743, %v747
        %749 = vset.pattern.permute.xlu0 0
        %750 = vperm.xlu0 %749, %v748
        %v751 = vpop.permute.xlu0 %750
        %v753 = vadd.f32 %v739, %v751
        %v754 = vadd.f32 %v742, %v751
        %v757 = vlaneseq
        %v758 = vshrl.u32 %v757, 7
        %v759 = vsub.s32 %v327, %v758
        %v760 = vrot.slane %v753, %v759
        %v761 = vlaneseq
        %v762 = vshrl.u32 %v761, 7
        %v763 = vsub.s32 %v327, %v762
        %v764 = vrot.slane %v754, %v763
        %vm767 = vcmask 57344
        %768 = vst.msk [vmem:[%s304] sm:$0x1] %vm767, %v760
        %769 = vst.msk [vmem:[%s304 + $0x1] sm:$0x1] %vm767, %v764
        %s770 = sand.u32 %s193, 1
        %s771 = scalar_lea.sflag [#allocation4], %s770
        %s772 = sand.u32 %s193, 1
        %s773 = smul.addr %s772, 2
        %s774 = scalar_lea.vmem [#allocation3], %s773
        // Predicated region
        $region49: #{_forward_jit.1} parent=47 // pred_check
          %p775 = pneg %p203
        $region50: #{_forward_jit.1} parent=47 // pred_check_branch
          %777 = sbr.rel (%p775) target = $region52
        $region51: #{_forward_jit.1} parent=47 // pred_region
          %s778 = smul.u32 2, %s23
          %s780 = ssub.s32 32, 32
          %781 = vsyncadd %s771, %s780
          %s782 = smul.addr %s778, 16
          %s783 = scalar_lea.hbm %s7, %s782
          %s784 = sshll.u32 %s774, 4
          %s785 = int_to_ptr.vmem [resolvable:$true] %s784
          %790 = dma.vmem_to_hbm [thread:$0]  %s785, 32, %s783, %s771, 16, 16, 1
        $region52: #{_forward_jit.1} parent=47 // pred_fallthru
          _
      $region48: #{_forward_jit.1} parent=5 // pred_fallthru
        _
      %p791 = scmp.le.s32.totalorder 2, %s18
      // Predicated region
      $region53: #{_forward_jit.1} parent=5 // pred_check
        %p792 = pneg %p791
      $region54: #{_forward_jit.1} parent=5 // pred_check_branch
        %794 = sbr.rel (%p792) target = $region56
      $region55: #{_forward_jit.1} parent=5 // pred_region
        %s795 = ssub.s32 %s18, 2
        // Predicated region
        $region57: #{_forward_jit.1} parent=55 // pred_check
          %p796 = pneg %p209
        $region58: #{_forward_jit.1} parent=55 // pred_check_branch
          %798 = sbr.rel (%p796) target = $region60
        $region59: #{_forward_jit.1} parent=55 // pred_region
          %s799 = sand.u32 %s194, 1
          %s800 = scalar_lea.sflag [#allocation4], %s799
          %s801 = sand.u32 %s194, 1
          %s802 = smul.addr %s801, 2
          %s803 = scalar_lea.vmem [#allocation3], %s802
          %804 = dma.done %s800, 32
        $region60: #{_forward_jit.1} parent=55 // pred_fallthru
          _
      $region56: #{_forward_jit.1} parent=5 // pred_fallthru
        _
    $region6: #{_forward_jit.1} parent=1 // loop_footer
      %s22 = sadd.s32 1, %s18
    $region7: #{_forward_jit.1} parent=1 // loop_footer_branch
      %17 = sbr.rel target = $region3
    $region8: #{_forward_jit.1} parent=1 // loop_exit
      _
    %805 = vsyncpa [#allocation4], 1
    %s806 = scalar_lea.sflag [#allocation4], 1
    %807 = vsyncpa %s806, 1

</llo_original>
